<compile_context>
chip_gen: v7x
topology: tpu7x:2x2x1
jax: 0.10.0
libtpu: 0.0.40
codegen_flags: <defaults>
</compile_context>

<pallas_src>
import math
from typing import NamedTuple

import jax
import jax.numpy as jnp
from jax.experimental import pallas as pl
from jax.experimental.pallas import tpu as pltpu


# ----------------------------- small helpers -----------------------------
def _round_up(a, b):
    return ((a + b - 1) // b) * b


def _lcm(a, b):
    return a * b // math.gcd(a, b)


def _default_compute_dtype():
    """bf16 dequant on chips with a bf16 VALU (v6e/v7x); f32 elsewhere (v5e and older)."""
    try:
        kind = jax.devices()[0].device_kind.lower()
    except Exception:
        return jnp.float32
    return jnp.bfloat16 if ("v6" in kind or "v7" in kind) else jnp.float32


# ----------------------------- quantization glue (plain JAX) -----------------------------
def _quantize_uintx(weights, group_size, nbit):
    """Mirror of torchao _quantize(..., has_weight_zeros=True, signed=False)."""
    qmin, qmax = 0, (1 << nbit) - 1
    n, k = weights.shape
    v = weights.reshape(-1, group_size)
    vmins = v.min(axis=1)
    vmaxs = v.max(axis=1)
    scales = (vmaxs - vmins) / (qmax - qmin)
    scales = jnp.where(scales > 0, scales, 1.0)  # guard constant groups (avoid div-by-zero)
    zeros = qmin - jnp.round(vmins / scales)
    q = jnp.clip(jnp.round(v / scales[:, None]) + zeros[:, None], qmin, qmax)
    q = q.reshape(n, k).astype(jnp.int32)        # unsigned nbit values (0..2^nbit-1)
    return q, scales.reshape(n, -1), zeros.reshape(n, -1)


# ----------------------------- packed-weight container -----------------------------
class PackedWeights(NamedTuple):
    q_packed: jax.Array   # (k_pad // 2, n_pad) uint8, two 4-bit values per byte
    s_tiles: jax.Array    # (k_pad // tk, tk // group_size, n_pad) in compute dtype
    z_tiles: jax.Array    # same shape/dtype as s_tiles (already equals -zero * scale)
    n: int
    k: int
    n_pad: int
    k_pad: int
    tn: int
    tk: int
    group_size: int


def pack_weights_for_tpu(q_nk, weight_scales, weight_zeros, group_size, *,
                         tn=None, tk=None, compute_dtype=None):
    """Lay out group-quantized uintx weights for the Pallas kernel.

    q_nk:          (N, K) unsigned nbit values (0..15)
    weight_scales: (K // group_size, N) f32  (module layout)
    weight_zeros:  (K // group_size, N) f32  (module layout, already -zero * scale)
    """
    n, k = q_nk.shape
    gs = group_size
    assert k % gs == 0
    assert gs % 8 == 0, "TPU kernel needs group_size to be a multiple of 8"
    if compute_dtype is None:
        compute_dtype = _default_compute_dtype()

    if tk is None:
        base = _lcm(2 * gs, 256)
        k_ceil = _round_up(k, base)
        tk = base
        # Deep K tiles (up to 2048) -> fewer, fatter grid steps for decode; capped by K itself.
        while tk * 2 <= min(k_ceil, 2048):
            tk *= 2
    if tn is None:
        tn = 512 if n >= 512 else (256 if n >= 256 else 128)
    assert tk % (2 * gs) == 0 and tk % 256 == 0
    assert tn % 128 == 0

    k_pad = _round_up(k, tk)
    n_pad = _round_up(n, tn)
    g_pad = k_pad // gs
    ng = tk // gs                                  # quantization groups per K tile

    # Weights transposed to (K, N); zero padding dequantizes to 0 (scale/zero pads are 0).
    q_kn = jnp.zeros((k_pad, n_pad), jnp.int32).at[:k, :n].set(q_nk.T.astype(jnp.int32))
    # Nibble-pack: within each K tile, packed row r stores original rows r (lo) and r + tk//2 (hi).
    q4 = q_kn.reshape(k_pad // tk, 2, tk // 2, n_pad)
    q_packed = (q4[:, 0] | (q4[:, 1] << 4)).reshape(k_pad // 2, n_pad).astype(jnp.uint8)

    s_pad = jnp.zeros((g_pad, n_pad), jnp.float32).at[: k // gs, :n].set(weight_scales)
    z_pad = jnp.zeros((g_pad, n_pad), jnp.float32).at[: k // gs, :n].set(weight_zeros)
    s_tiles = s_pad.reshape(k_pad // tk, ng, n_pad).astype(compute_dtype)
    z_tiles = z_pad.reshape(k_pad // tk, ng, n_pad).astype(compute_dtype)

    return PackedWeights(q_packed, s_tiles, z_tiles, n, k, n_pad, k_pad, tn, tk, gs)


# ----------------------------- Pallas kernel (hot path) -----------------------------
def _qlinear_kernel(x_ref, q_ref, s_ref, z_ref, o_ref, acc_ref):
    # x_ref: (tm, tk) bf16 | q_ref: (tk//2, tn) uint8 nibble-packed
    # s_ref/z_ref: (1, ng, tn) compute dtype | o_ref: (tm, tn) out dtype
    # acc_ref: (tm, tn) f32 scratch (lives across the K grid axis)
    k_idx = pl.program_id(2)

    @pl.when(k_idx == 0)
    def _init():
        acc_ref[...] = jnp.zeros_like(acc_ref)

    tkh, tn = q_ref.shape                  # tk // 2
    ng = s_ref.shape[1]                    # groups covered by this K tile
    ngh = ng // 2
    gs = (2 * tkh) // ng                   # group_size

    # Unpack two 4-bit values per byte on the VPU. uint8 storage -> no sign-extension mask on hi.
    qp = q_ref[...].astype(jnp.int32)      # values 0..255
    lo = qp & 0xF                          # original K rows [0, tk/2) of this tile
    hi = qp >> 4                           # original K rows [tk/2, tk)

    s = s_ref[0]                           # (ng, tn) lane-dense rows
    z = z_ref[0]
    cdt = s.dtype                          # bf16 on v6e/v7x, f32 on v5e

    def dequant(qi, s_half, z_half):
        qf = qi.astype(cdt)
        w = (qf.reshape(ngh, gs, tn) * s_half.reshape(ngh, 1, tn)
             + z_half.reshape(ngh, 1, tn))
        return w.reshape(tkh, tn).astype(jnp.bfloat16)   # no-op when cdt is bf16

    w_lo = dequant(lo, s[:ngh], z[:ngh])
    w_hi = dequant(hi, s[ngh:], z[ngh:])

    x = x_ref[...]                         # (tm, tk) bf16 (cast once in the wrapper)
    # Single fused accumulator update: one tm*tn f32 read-modify-write per step.
    acc_ref[...] += (
        jnp.dot(x[:, :tkh], w_lo, preferred_element_type=jnp.float32)
        + jnp.dot(x[:, tkh:], w_hi, preferred_element_type=jnp.float32))

    @pl.when(k_idx == pl.num_programs(2) - 1)
    def _finalize():
        o_ref[...] = acc_ref[...].astype(o_ref.dtype)


def uintx_linear(x, packed: PackedWeights, *, out_dtype=None):
    """Forward pass of UIntxWeightOnlyQuantizedLinear: x (..., K) -> (..., N)."""
    assert x.ndim >= 2
    lead = x.shape[:-1]
    k = x.shape[-1]
    assert k == packed.k
    if out_dtype is None:
        out_dtype = x.dtype
    n, n_pad, k_pad, tn, tk = packed.n, packed.n_pad, packed.k_pad, packed.tn, packed.tk

    # Activations in bf16: halves x HBM traffic (x is re-streamed once per N tile) and VMEM use.
    x2 = x.reshape(-1, k).astype(jnp.bfloat16)
    m = x2.shape[0]
    # Shape-dependent M tiles: big tiles for prefill, 16-rounded (bf16 sublane) tile for decode.
    if m >= 512:
        tm = 512
    elif m >= 256:
        tm = 256
    else:
        tm = _round_up(m, 16)
    m_pad = _round_up(m, tm)
    x2 = jnp.pad(x2, ((0, m_pad - m), (0, k_pad - k)))

    ng = tk // packed.group_size
    grid = (m_pad // tm, n_pad // tn, k_pad // tk)
    # TODO(synk): on v7x, a (1, 1, K) decode grid leaves one TensorCore idle; explicit M/N core
    #             splitting would need a core_map restructure and is not done here.

    # Explicit scoped-VMEM budget (v7x has only 64 MiB physical VMEM).
    s_item = jnp.dtype(packed.s_tiles.dtype).itemsize
    o_item = jnp.dtype(out_dtype).itemsize
    est = (tm * tn * 4                       # f32 accumulator scratch
           + 2 * tm * tk * 2                 # double-buffered bf16 x block
           + 2 * (tk // 2) * tn              # double-buffered uint8 packed-weight block
           + 4 * ng * tn * s_item            # double-buffered scales + zeros
           + 2 * tm * tn * o_item)           # double-buffered output block
    vmem_limit = min(max(int(est * 1.5), 32 << 20), 56 << 20)

    out = pl.pallas_call(
        _qlinear_kernel,
        out_shape=jax.ShapeDtypeStruct((m_pad, n_pad), out_dtype),
        grid_spec=pltpu.PrefetchScalarGridSpec(
            num_scalar_prefetch=0,
            grid=grid,
            in_specs=[
                pl.BlockSpec((tm, tk), lambda i, j, kk: (i, kk)),
                pl.BlockSpec((tk // 2, tn), lambda i, j, kk: (kk, j)),
                pl.BlockSpec((1, ng, tn), lambda i, j, kk: (kk, 0, j)),
                pl.BlockSpec((1, ng, tn), lambda i, j, kk: (kk, 0, j)),
            ],
            out_specs=pl.BlockSpec((tm, tn), lambda i, j, kk: (i, j)),
            scratch_shapes=[pltpu.VMEM((tm, tn), jnp.float32)],
        ),
        compiler_params=pltpu.CompilerParams(
            dimension_semantics=("parallel", "parallel", "arbitrary"),
            vmem_limit_bytes=vmem_limit),
    )(x2, packed.q_packed, packed.s_tiles, packed.z_tiles)

    return out[:m, :n].reshape(*lead, n)


# ----------------------------- module-like wrapper -----------------------------
class UIntxWeightOnlyQuantizedLinearTPU:
    """JAX/Pallas analogue of torchao's UIntxWeightOnlyQuantizedLinear."""

    def quantize_and_pack_weights(self, weights, nbit, group_size, *, tn=None, tk=None,
                                  compute_dtype=None):
        # TODO(synk): nbit in 5..8 needs a different HBM packing (1 value/byte); only <=4 packed here.
        assert 1 <= nbit <= 4
        self.nbit = nbit
        self.group_size = group_size
        q, scales, zeros = _quantize_uintx(weights, group_size, nbit)
        weight_scales = scales.T                     # (K // gs, N), exactly as the module stores it
        weight_zeros = -zeros.T * weight_scales      # (K // gs, N)
        self.weight_scales = weight_scales
        self.weight_zeros = weight_zeros
        # TODO(synk): the MPS-specific pack_weight_op layout has no Pallas equivalent; this uses a
        #             TPU-oriented nibble packing instead (2x 4-bit per uint8 along K, per K tile).
        self.packed_weights = pack_weights_for_tpu(
            q, weight_scales, weight_zeros, group_size, tn=tn, tk=tk,
            compute_dtype=compute_dtype)

    def __call__(self, x):
        # NOTE: the matmul runs with bf16 operands (f32 accumulation); results differ from the
        # module's full-precision dequant+matmul at the ~bf16 error level.
        return uintx_linear(x, self.packed_weights)


# ----------------------------- demo / self-check -----------------------------
if __name__ == "__main__":
    key = jax.random.PRNGKey(0)
    kx, kw = jax.random.split(key)

    batch, seq = 2, 8            # leading dims (flattened inside forward -> M = 16)
    k, n = 512, 256              # in/out features (small; padded/tiled internally)
    group_size, nbit = 64, 4

    x = jax.random.normal(kx, (batch, seq, k), dtype=jnp.float32)
    weights = jax.random.normal(kw, (n, k), dtype=jnp.float32)

    layer = UIntxWeightOnlyQuantizedLinearTPU()
    # Small tiles so the demo exercises a (1, 2, 2) grid including the K-accumulator path.
    layer.quantize_and_pack_weights(weights, nbit, group_size, tn=128, tk=256)

    out = jax.block_until_ready(layer(x))
    assert out.shape == (batch, seq, n)

    # Pure-JAX f32 reference (dequantize full weight, dense matmul).
    q, scales, zeros = _quantize_uintx(weights, group_size, nbit)
    G = k // group_size
    w_deq = (q.astype(jnp.float32).reshape(n, G, group_size)
             * scales[:, :, None]
             + (-zeros * scales)[:, :, None]).reshape(n, k)
    ref = (x.reshape(-1, k) @ w_deq.T).reshape(batch, seq, n)

    # Kernel runs the matmul with bf16 operands (f32 accumulation) -> loosened tolerance.
    err = float(jnp.max(jnp.abs(out - ref)))
    ref_scale = float(jnp.max(jnp.abs(ref)))
    assert err <= 2e-2 * ref_scale + 1e-2, f"mismatch vs reference: err={err}, ref_scale={ref_scale}"
    print("KERNEL_OK")
</pallas_src>

<mosaic_0001>
module attributes {stable_mosaic.version = 11 : i64} {
  func.func @_qlinear_kernel(%arg0: i32, %arg1: i32, %arg2: i32, %arg3: memref<16x256xbf16, #tpu.memory_space<vmem>>, %arg4: memref<128x128xi8, #tpu.memory_space<vmem>>, %arg5: memref<1x4x128xf32, #tpu.memory_space<vmem>>, %arg6: memref<1x4x128xf32, #tpu.memory_space<vmem>>, %arg7: memref<16x128xf32, #tpu.memory_space<vmem>>, %arg8: memref<16x128xf32, #tpu.memory_space<vmem>>) attributes {dimension_semantics = [#tpu.dimension_semantics<parallel>, #tpu.dimension_semantics<parallel>, #tpu.dimension_semantics<arbitrary>], iteration_bounds = array<i64: 1, 2, 2>, scalar_prefetch = 0 : i64, scratch_operands = 1 : i64, tpu.core_type = #tpu.core_type<tc>, window_params = [{transform_indices = @transform_0, window_bounds = array<i64: 16, 256>}, {transform_indices = @transform_1, window_bounds = array<i64: 128, 128>}, {transform_indices = @transform_2, window_bounds = array<i64: 1, 4, 128>}, {transform_indices = @transform_3, window_bounds = array<i64: 1, 4, 128>}, {transform_indices = @transform_4, window_bounds = array<i64: 16, 128>}]} {
    %c0_i32 = arith.constant 0 : i32
    %0 = arith.cmpi eq, %arg2, %c0_i32 : i32
    %1 = arith.extui %0 : i1 to i32
    %c0_i32_0 = arith.constant 0 : i32
    %2 = arith.cmpi ne, %1, %c0_i32_0 : i32
    scf.if %2 {
      %cst_16 = arith.constant 0.000000e+00 : f32
      %49 = vector.broadcast %cst_16 : f32 to vector<16x128xf32>
      %c0_17 = arith.constant 0 : index
      %c0_18 = arith.constant 0 : index
      %50 = vector.load %arg8[%c0_17, %c0_18] : memref<16x128xf32, #tpu.memory_space<vmem>>, vector<16x128xf32>
      tpu.vector_store %arg8[%c0_17, %c0_18], %49 {strides = array<i32>} : memref<16x128xf32, #tpu.memory_space<vmem>>, vector<16x128xf32>,
    } else {
    }
    %c0 = arith.constant 0 : index
    %c0_1 = arith.constant 0 : index
    %3 = vector.load %arg4[%c0, %c0_1] : memref<128x128xi8, #tpu.memory_space<vmem>>, vector<128x128xi8>
    %4 = arith.extui %3 : vector<128x128xi8> to vector<128x128xi32>
    %c15_i32 = arith.constant 15 : i32
    %5 = vector.broadcast %c15_i32 : i32 to vector<128x128xi32>
    %6 = arith.andi %4, %5 : vector<128x128xi32>
    %c4_i32 = arith.constant 4 : i32
    %7 = vector.broadcast %c4_i32 : i32 to vector<128x128xi32>
    %8 = arith.shrsi %4, %7 : vector<128x128xi32>
    %c0_2 = arith.constant 0 : index
    %c0_3 = arith.constant 0 : index
    %c0_4 = arith.constant 0 : index
    %9 = vector.load %arg5[%c0_2, %c0_3, %c0_4] : memref<1x4x128xf32, #tpu.memory_space<vmem>>, vector<1x4x128xf32>
    %10 = vector.shape_cast %9 : vector<1x4x128xf32> to vector<4x128xf32>
    %c0_5 = arith.constant 0 : index
    %c0_6 = arith.constant 0 : index
    %c0_7 = arith.constant 0 : index
    %11 = vector.load %arg6[%c0_5, %c0_6, %c0_7] : memref<1x4x128xf32, #tpu.memory_space<vmem>>, vector<1x4x128xf32>
    %12 = vector.shape_cast %11 : vector<1x4x128xf32> to vector<4x128xf32>
    %13 = vector.extract_strided_slice %10 {offsets = [0, 0], sizes = [2, 128], strides = [1, 1]} : vector<4x128xf32> to vector<2x128xf32>
    %14 = vector.extract_strided_slice %12 {offsets = [0, 0], sizes = [2, 128], strides = [1, 1]} : vector<4x128xf32> to vector<2x128xf32>
    %15 = arith.sitofp %6 : vector<128x128xi32> to vector<128x128xf32>
    %16 = vector.shape_cast %15 : vector<128x128xf32> to vector<2x64x128xf32>
    %17 = vector.shape_cast %13 : vector<2x128xf32> to vector<2x1x128xf32>
    %18 = vector.broadcast %17 : vector<2x1x128xf32> to vector<2x64x128xf32>
    %19 = arith.mulf %16, %18 : vector<2x64x128xf32>
    %20 = vector.shape_cast %14 : vector<2x128xf32> to vector<2x1x128xf32>
    %21 = vector.broadcast %20 : vector<2x1x128xf32> to vector<2x64x128xf32>
    %22 = arith.addf %19, %21 : vector<2x64x128xf32>
    %23 = vector.shape_cast %22 : vector<2x64x128xf32> to vector<128x128xf32>
    %24 = arith.truncf %23 : vector<128x128xf32> to vector<128x128xbf16>
    %25 = vector.extract_strided_slice %10 {offsets = [2, 0], sizes = [2, 128], strides = [1, 1]} : vector<4x128xf32> to vector<2x128xf32>
    %26 = vector.extract_strided_slice %12 {offsets = [2, 0], sizes = [2, 128], strides = [1, 1]} : vector<4x128xf32> to vector<2x128xf32>
    %27 = arith.sitofp %8 : vector<128x128xi32> to vector<128x128xf32>
    %28 = vector.shape_cast %27 : vector<128x128xf32> to vector<2x64x128xf32>
    %29 = vector.shape_cast %25 : vector<2x128xf32> to vector<2x1x128xf32>
    %30 = vector.broadcast %29 : vector<2x1x128xf32> to vector<2x64x128xf32>
    %31 = arith.mulf %28, %30 : vector<2x64x128xf32>
    %32 = vector.shape_cast %26 : vector<2x128xf32> to vector<2x1x128xf32>
    %33 = vector.broadcast %32 : vector<2x1x128xf32> to vector<2x64x128xf32>
    %34 = arith.addf %31, %33 : vector<2x64x128xf32>
    %35 = vector.shape_cast %34 : vector<2x64x128xf32> to vector<128x128xf32>
    %36 = arith.truncf %35 : vector<128x128xf32> to vector<128x128xbf16>
    %c0_8 = arith.constant 0 : index
    %c0_9 = arith.constant 0 : index
    %37 = vector.load %arg3[%c0_8, %c0_9] : memref<16x256xbf16, #tpu.memory_space<vmem>>, vector<16x256xbf16>
    %c0_10 = arith.constant 0 : index
    %c0_11 = arith.constant 0 : index
    %38 = vector.load %arg8[%c0_10, %c0_11] : memref<16x128xf32, #tpu.memory_space<vmem>>, vector<16x128xf32>
    %39 = vector.extract_strided_slice %37 {offsets = [0, 0], sizes = [16, 128], strides = [1, 1]} : vector<16x256xbf16> to vector<16x128xbf16>
    %cst = arith.constant dense<0.000000e+00> : vector<16x128xf32>
    %40 = tpu.matmul %39, %24, %cst {dimension_numbers = #tpu.dot_dimension_numbers<[1], [0], [0], [1], [0, 0, 1, 1], [], []>} : vector<16x128xbf16>, vector<128x128xbf16>, vector<16x128xf32> -> vector<16x128xf32>
    %41 = vector.extract_strided_slice %37 {offsets = [0, 128], sizes = [16, 128], strides = [1, 1]} : vector<16x256xbf16> to vector<16x128xbf16>
    %cst_12 = arith.constant dense<0.000000e+00> : vector<16x128xf32>
    %42 = tpu.matmul %41, %36, %cst_12 {dimension_numbers = #tpu.dot_dimension_numbers<[1], [0], [0], [1], [0, 0, 1, 1], [], []>} : vector<16x128xbf16>, vector<128x128xbf16>, vector<16x128xf32> -> vector<16x128xf32>
    %43 = arith.addf %40, %42 : vector<16x128xf32>
    %44 = arith.addf %38, %43 : vector<16x128xf32>
    %c0_13 = arith.constant 0 : index
    %c0_14 = arith.constant 0 : index
    %45 = vector.load %arg8[%c0_13, %c0_14] : memref<16x128xf32, #tpu.memory_space<vmem>>, vector<16x128xf32>
    tpu.vector_store %arg8[%c0_13, %c0_14], %44 {strides = array<i32>} : memref<16x128xf32, #tpu.memory_space<vmem>>, vector<16x128xf32>,
    %c1_i32 = arith.constant 1 : i32
    %46 = arith.cmpi eq, %arg2, %c1_i32 : i32
    %47 = arith.extui %46 : i1 to i32
    %c0_i32_15 = arith.constant 0 : i32
    %48 = arith.cmpi ne, %47, %c0_i32_15 : i32
    scf.if %48 {
      %c0_16 = arith.constant 0 : index
      %c0_17 = arith.constant 0 : index
      %49 = vector.load %arg8[%c0_16, %c0_17] : memref<16x128xf32, #tpu.memory_space<vmem>>, vector<16x128xf32>
      %c0_18 = arith.constant 0 : index
      %c0_19 = arith.constant 0 : index
      %50 = vector.load %arg7[%c0_18, %c0_19] : memref<16x128xf32, #tpu.memory_space<vmem>>, vector<16x128xf32>
      tpu.vector_store %arg7[%c0_18, %c0_19], %49 {strides = array<i32>} : memref<16x128xf32, #tpu.memory_space<vmem>>, vector<16x128xf32>,
    } else {
    }
    return
  }
  func.func @transform_0(%arg0: i32, %arg1: i32, %arg2: i32) -> (i32, i32) {
    %c0_i32 = arith.constant 0 : i32
    return %arg0, %arg2 : i32, i32
  }
  func.func @transform_1(%arg0: i32, %arg1: i32, %arg2: i32) -> (i32, i32) {
    %c0_i32 = arith.constant 0 : i32
    return %arg2, %arg1 : i32, i32
  }
  func.func @transform_2(%arg0: i32, %arg1: i32, %arg2: i32) -> (i32, i32, i32) {
    %c0_i32 = arith.constant 0 : i32
    %c0_i32_0 = arith.constant 0 : i32
    return %arg2, %c0_i32, %arg1 : i32, i32, i32
  }
  func.func @transform_3(%arg0: i32, %arg1: i32, %arg2: i32) -> (i32, i32, i32) {
    %c0_i32 = arith.constant 0 : i32
    %c0_i32_0 = arith.constant 0 : i32
    return %arg2, %c0_i32, %arg1 : i32, i32, i32
  }
  func.func @transform_4(%arg0: i32, %arg1: i32, %arg2: i32) -> (i32, i32) {
    %c0_i32 = arith.constant 0 : i32
    return %arg0, %arg1 : i32, i32
  }
}

</mosaic_0001>

<llo_original>
// kernel: tpu_custom_call.1
$region0: #{tpu_custom_call.1}
  #allocation0 [shape = 'u32[]', space=smem, size = 0x4, offset = 0x4, fixed_abs, tag = 'smem constant byte address 0x4 - core index']
  #allocation1 [shape = 'u32[144,128]{1,0:T(1,128)}', space=vmem, size = 0x12000, scoped, tag = 'internal scratch']
  #allocation2 [shape = 'f32[16,128]{1,0:T(8,128)}', space=vmem, size = 0x2000, scoped, tag = 'scratch operand']
  %s0 = inlined_call_operand.hbm [shape: bf16[16,512], index: 0, kind: input, shape index: {}]
  %s1 = inlined_call_operand.hbm [shape: u8[256,256], index: 1, kind: input, shape index: {}]
  %s2 = inlined_call_operand.hbm [shape: f32[2,4,256], index: 2, kind: input, shape index: {}]
  %s3 = inlined_call_operand.hbm [shape: f32[2,4,256], index: 3, kind: input, shape index: {}]
  %s4 = inlined_call_operand.hbm [shape: f32[16,256], index: 4, kind: output, shape index: {}]
  %s5 = sld [smem:[#allocation0]]
  $region73: #{tpu_custom_call.1} parent=0
    _
  %s7 = ssub.s32 1, %s5
  %s8 = scalar_select 0, %s7, %s5
  $region1: #{tpu_custom_call.1} parent=0
    #allocation3 [shape = 'u8[16384]{0}', space=vmem, size = 0x4000, scoped, tag = 'input window, operand 0']
    #allocation4 [shape = 's32[2]{0}', space=sflag, size = 0x8, scoped, tag = 'scoped memory for tpu_custom_call.1']
    #allocation5 [shape = 's32[2]{0}', space=sflag, size = 0x8, scoped, tag = 'scoped memory for tpu_custom_call.1']
    #allocation6 [shape = 'u8[32768]{0}', space=vmem, size = 0x8000, scoped, tag = 'input window, operand 1']
    #allocation7 [shape = 's32[2]{0}', space=sflag, size = 0x8, scoped, tag = 'scoped memory for tpu_custom_call.1']
    #allocation8 [shape = 'u8[4096]{0}', space=vmem, size = 0x1000, scoped, tag = 'input window, operand 2']
    #allocation9 [shape = 'u8[4096]{0}', space=vmem, size = 0x1000, scoped, tag = 'input window, operand 3']
    #allocation10 [shape = 's32[2]{0}', space=sflag, size = 0x8, scoped, tag = 'scoped memory for tpu_custom_call.1']
    #allocation11 [shape = 'u8[16384]{0}', space=vmem, size = 0x4000, scoped, tag = 'output window, operand 0']
    %9 = vsyncpa [#allocation4], 0
    %s10 = scalar_lea.sflag [#allocation4], 1
    %11 = vsyncpa %s10, 0
    %12 = vsyncpa [#allocation7], 0
    %s13 = scalar_lea.sflag [#allocation7], 1
    %14 = vsyncpa %s13, 0
    %15 = vsyncpa [#allocation10], 0
    %s16 = scalar_lea.sflag [#allocation10], 1
    %17 = vsyncpa %s16, 0
    %18 = vsyncpa [#allocation5], 0
    %s19 = scalar_lea.sflag [#allocation5], 1
    %20 = vsyncpa %s19, 0
    loop: start=0, step=1, limit=6
    $region2: #{tpu_custom_call.1} parent=1 // loop_pre_header
      _
    $region3: #{tpu_custom_call.1} parent=1 // loop_header
      %s22 = sphi 0, %s26
      %p23 = scmp.ge.s32.totalorder %s22, 6
      %s29 = sphi 0, %s48
      %s30 = sphi 0, %s44
      %s31 = sphi 0, %s40
      %s32 = sphi 0, %s29
      %s33 = sphi 0, %s30
      %s34 = sphi 0, %s31
      %s35 = sphi 0, %s32
      %s36 = sphi 0, %s33
      %s37 = sphi 0, %s34
      %s53 = sphi 0, %s55
      %s56 = sphi 0, %s53
      %s57 = sphi 0, %s56
      %s73 = sphi 0, %s57
      %s81 = sphi 0, %s83
      %s84 = sphi 0, %s81
      %s85 = sphi 0, %s84
      %s101 = sphi 0, %s85
      %s109 = sphi 0, %s111
      %s112 = sphi 0, %s109
      %s113 = sphi 0, %s112
      %s129 = sphi 0, %s113
      %s137 = sphi 0, %s139
      %s140 = sphi 0, %s137
      %s141 = sphi 0, %s140
      %s157 = sphi 0, %s141
      %s165 = sphi 0, %s167
      %s168 = sphi 0, %s165
      %s169 = sphi 0, %s168
      %s185 = sphi 0, %s169
    $region4: #{tpu_custom_call.1} parent=1 // loop_header_branch
      %25 = sbr.rel (%p23) target = $region8
    $region5: #{tpu_custom_call.1} parent=1 // loop_body
      %s27 = ssub.s32 %s22, 1
      %s28 = ssub.s32 %s22, 2
      %s38 = sadd.s32 1, %s31
      %p39 = scmp.ge.s32.totalorder %s38, 2
      %s40 = scalar_select %p39, 0, %s38
      %s41 = sadd.s32 1, %s30
      %s42 = scalar_select %p39, %s41, %s30
      %p43 = scmp.ge.s32.totalorder %s42, 2
      %s44 = scalar_select %p43, 0, %s42
      %s45 = sadd.s32 1, %s29
      %s46 = scalar_select %p43, %s45, %s29
      %p47 = scmp.ge.s32.totalorder %s46, 1
      %s48 = scalar_select %p47, 0, %s46
      %s49 = ssub.s32 %s29, %s48
      %s50 = ssub.s32 %s31, %s40
      %s51 = sor.u32 %s49, %s50
      %p52 = scmp.eq.s32.totalorder %s51, 0
      %s54 = sadd.s32 %s53, 1
      %s55 = scalar_select %p52, %s53, %s54
      %p58 = pneg %p52
      %p59 = scmp.eq.s32.totalorder %s22, 3
      %p60 = por %p58, %p59
      %p61 = scmp.ne.s32.totalorder %s53, %s56
      %p62 = scmp.eq.s32.totalorder %s22, 0
      %p63 = por %p61, %p62
      %p64 = scmp.ne.s32.totalorder %s53, %s56
      %p65 = scmp.eq.s32.totalorder %s27, 3
      %p66 = por %p64, %p65
      %p67 = scmp.ne.s32.totalorder %s56, %s57
      %p68 = scmp.eq.s32.totalorder %s27, 0
      %p69 = por %p67, %p68
      %p70 = scmp.ne.s32.totalorder %s56, %s57
      %p71 = scmp.eq.s32.totalorder %s28, 3
      %p72 = por %p70, %p71
      %p74 = scmp.ne.s32.totalorder %s57, %s73
      %p75 = scmp.eq.s32.totalorder %s28, 0
      %p76 = por %p74, %p75
      %s77 = ssub.s32 %s31, %s40
      %s78 = ssub.s32 %s30, %s44
      %s79 = sor.u32 %s77, %s78
      %p80 = scmp.eq.s32.totalorder %s79, 0
      %s82 = sadd.s32 %s81, 1
      %s83 = scalar_select %p80, %s81, %s82
      %p86 = pneg %p80
      %p87 = scmp.eq.s32.totalorder %s22, 3
      %p88 = por %p86, %p87
      %p89 = scmp.ne.s32.totalorder %s81, %s84
      %p90 = scmp.eq.s32.totalorder %s22, 0
      %p91 = por %p89, %p90
      %p92 = scmp.ne.s32.totalorder %s81, %s84
      %p93 = scmp.eq.s32.totalorder %s27, 3
      %p94 = por %p92, %p93
      %p95 = scmp.ne.s32.totalorder %s84, %s85
      %p96 = scmp.eq.s32.totalorder %s27, 0
      %p97 = por %p95, %p96
      %p98 = scmp.ne.s32.totalorder %s84, %s85
      %p99 = scmp.eq.s32.totalorder %s28, 3
      %p100 = por %p98, %p99
      %p102 = scmp.ne.s32.totalorder %s85, %s101
      %p103 = scmp.eq.s32.totalorder %s28, 0
      %p104 = por %p102, %p103
      %s105 = ssub.s32 %s31, %s40
      %s106 = ssub.s32 %s30, %s44
      %s107 = sor.u32 %s105, %s106
      %p108 = scmp.eq.s32.totalorder %s107, 0
      %s110 = sadd.s32 %s109, 1
      %s111 = scalar_select %p108, %s109, %s110
      %p114 = pneg %p108
      %p115 = scmp.eq.s32.totalorder %s22, 3
      %p116 = por %p114, %p115
      %p117 = scmp.ne.s32.totalorder %s109, %s112
      %p118 = scmp.eq.s32.totalorder %s22, 0
      %p119 = por %p117, %p118
      %p120 = scmp.ne.s32.totalorder %s109, %s112
      %p121 = scmp.eq.s32.totalorder %s27, 3
      %p122 = por %p120, %p121
      %p123 = scmp.ne.s32.totalorder %s112, %s113
      %p124 = scmp.eq.s32.totalorder %s27, 0
      %p125 = por %p123, %p124
      %p126 = scmp.ne.s32.totalorder %s112, %s113
      %p127 = scmp.eq.s32.totalorder %s28, 3
      %p128 = por %p126, %p127
      %p130 = scmp.ne.s32.totalorder %s113, %s129
      %p131 = scmp.eq.s32.totalorder %s28, 0
      %p132 = por %p130, %p131
      %s133 = ssub.s32 %s31, %s40
      %s134 = ssub.s32 %s30, %s44
      %s135 = sor.u32 %s133, %s134
      %p136 = scmp.eq.s32.totalorder %s135, 0
      %s138 = sadd.s32 %s137, 1
      %s139 = scalar_select %p136, %s137, %s138
      %p142 = pneg %p136
      %p143 = scmp.eq.s32.totalorder %s22, 3
      %p144 = por %p142, %p143
      %p145 = scmp.ne.s32.totalorder %s137, %s140
      %p146 = scmp.eq.s32.totalorder %s22, 0
      %p147 = por %p145, %p146
      %p148 = scmp.ne.s32.totalorder %s137, %s140
      %p149 = scmp.eq.s32.totalorder %s27, 3
      %p150 = por %p148, %p149
      %p151 = scmp.ne.s32.totalorder %s140, %s141
      %p152 = scmp.eq.s32.totalorder %s27, 0
      %p153 = por %p151, %p152
      %p154 = scmp.ne.s32.totalorder %s140, %s141
      %p155 = scmp.eq.s32.totalorder %s28, 3
      %p156 = por %p154, %p155
      %p158 = scmp.ne.s32.totalorder %s141, %s157
      %p159 = scmp.eq.s32.totalorder %s28, 0
      %p160 = por %p158, %p159
      %s161 = ssub.s32 %s29, %s48
      %s162 = ssub.s32 %s30, %s44
      %s163 = sor.u32 %s161, %s162
      %p164 = scmp.eq.s32.totalorder %s163, 0
      %s166 = sadd.s32 %s165, 1
      %s167 = scalar_select %p164, %s165, %s166
      %p170 = pneg %p164
      %p171 = scmp.eq.s32.totalorder %s22, 3
      %p172 = por %p170, %p171
      %p173 = scmp.ne.s32.totalorder %s165, %s168
      %p174 = scmp.eq.s32.totalorder %s22, 0
      %p175 = por %p173, %p174
      %p176 = scmp.ne.s32.totalorder %s165, %s168
      %p177 = scmp.eq.s32.totalorder %s27, 3
      %p178 = por %p176, %p177
      %p179 = scmp.ne.s32.totalorder %s168, %s169
      %p180 = scmp.eq.s32.totalorder %s27, 0
      %p181 = por %p179, %p180
      %p182 = scmp.ne.s32.totalorder %s168, %s169
      %p183 = scmp.eq.s32.totalorder %s28, 3
      %p184 = por %p182, %p183
      %p186 = scmp.ne.s32.totalorder %s169, %s185
      %p187 = scmp.eq.s32.totalorder %s28, 0
      %p188 = por %p186, %p187
      %p189 = scmp.le.s32.totalorder 1, %s22
      %p190 = scmp.lt.s32.totalorder %s22, 5
      %p191 = pnand %p189, %p190
      %p192 = pneg %p191
      // Predicated region
      $region9: #{tpu_custom_call.1} parent=5 // pred_check
        _
      $region10: #{tpu_custom_call.1} parent=5 // pred_check_branch
        %194 = sbr.rel (%p191) target = $region12
      $region11: #{tpu_custom_call.1} parent=5 // pred_region
        %s195 = ssub.s32 %s22, 1
      $region12: #{tpu_custom_call.1} parent=5 // pred_fallthru
        _
      %p196 = scmp.lt.s32.totalorder %s22, 4
      // Predicated region
      $region13: #{tpu_custom_call.1} parent=5 // pred_check
        %p197 = pneg %p196
      $region14: #{tpu_custom_call.1} parent=5 // pred_check_branch
        %199 = sbr.rel (%p197) target = $region16
      $region15: #{tpu_custom_call.1} parent=5 // pred_region
        // Predicated region
        $region17: #{tpu_custom_call.1} parent=15 // pred_check
          %p200 = pneg %p63
        $region18: #{tpu_custom_call.1} parent=15 // pred_check_branch
          %202 = sbr.rel (%p200) target = $region20
        $region19: #{tpu_custom_call.1} parent=15 // pred_region
          %s203 = sand.u32 %s53, 1
          %s204 = scalar_lea.sflag [#allocation4], %s203
          %s205 = sand.u32 %s53, 1
          %s206 = smul.addr %s205, 16
          %s207 = scalar_lea.vmem [#allocation3], %s206
          %s208 = smul.u32 2, %s29
          %s209 = smul.u32 2, %s31
          %s211 = ssub.s32 256, 256
          %212 = vsyncadd %s204, %s211
          %s213 = smul.addr %s208, 4
          %s214 = sadd.s32 %s209, %s213
          %s215 = smul.addr %s214, 64
          %s216 = scalar_lea.hbm %s0, %s215
          %s217 = sshll.u32 %s207, 4
          %s218 = int_to_ptr.vmem [resolvable:$true] %s217
          %223 = dma.hbm_to_vmem [thread:$0]  %s216, 256, %s218, %s204, 256, 128, 8
        $region20: #{tpu_custom_call.1} parent=15 // pred_fallthru
          _
        // Predicated region
        $region21: #{tpu_custom_call.1} parent=15 // pred_check
          %p224 = pneg %p91
        $region22: #{tpu_custom_call.1} parent=15 // pred_check_branch
          %226 = sbr.rel (%p224) target = $region24
        $region23: #{tpu_custom_call.1} parent=15 // pred_region
          %s227 = sand.u32 %s22, 1
          %s228 = scalar_lea.sflag [#allocation7], %s227
          %s229 = sand.u32 %s81, 1
          %s230 = smul.addr %s229, 32
          %s231 = scalar_lea.vmem [#allocation6], %s230
          %s232 = smul.u32 4, %s31
          %s234 = ssub.s32 512, 512
          %235 = vsyncadd %s228, %s234
          %s236 = smul.addr %s232, 2
          %s237 = sadd.s32 %s30, %s236
          %s238 = smul.addr %s237, 128
          %s239 = scalar_lea.hbm %s1, %s238
          %s240 = sshll.u32 %s231, 4
          %s241 = int_to_ptr.vmem [resolvable:$true] %s240
          %246 = dma.hbm_to_vmem [thread:$0]  %s239, 512, %s241, %s228, 256, 128, 8
        $region24: #{tpu_custom_call.1} parent=15 // pred_fallthru
          _
        // Predicated region
        $region25: #{tpu_custom_call.1} parent=15 // pred_check
          %p247 = pneg %p119
        $region26: #{tpu_custom_call.1} parent=15 // pred_check_branch
          %249 = sbr.rel (%p247) target = $region28
        $region27: #{tpu_custom_call.1} parent=15 // pred_region
          %s250 = sand.u32 %s22, 1
          %s251 = scalar_lea.sflag [#allocation7], %s250
          %s252 = sand.u32 %s109, 1
          %s253 = smul.addr %s252, 4
          %s254 = scalar_lea.vmem [#allocation8], %s253
          %s256 = ssub.s32 64, 64
          %257 = vsyncadd %s251, %s256
          %s258 = smul.addr %s31, 2
          %s259 = sadd.s32 %s30, %s258
          %s260 = smul.addr %s259, 64
          %s261 = scalar_lea.hbm %s2, %s260
          %s263 = sshll.u32 %s254, 4
          %s264 = int_to_ptr.vmem [resolvable:$true] %s263
          %266 = dma.hbm_to_vmem [thread:$0]  %s261, 64, %s264, %s251
        $region28: #{tpu_custom_call.1} parent=15 // pred_fallthru
          _
        // Predicated region
        $region29: #{tpu_custom_call.1} parent=15 // pred_check
          %p267 = pneg %p147
        $region30: #{tpu_custom_call.1} parent=15 // pred_check_branch
          %269 = sbr.rel (%p267) target = $region32
        $region31: #{tpu_custom_call.1} parent=15 // pred_region
          %s270 = sand.u32 %s137, 1
          %s271 = scalar_lea.sflag [#allocation10], %s270
          %s272 = sand.u32 %s137, 1
          %s273 = smul.addr %s272, 4
          %s274 = scalar_lea.vmem [#allocation9], %s273
          %s276 = ssub.s32 64, 64
          %277 = vsyncadd %s271, %s276
          %s278 = smul.addr %s31, 2
          %s279 = sadd.s32 %s30, %s278
          %s280 = smul.addr %s279, 64
          %s281 = scalar_lea.hbm %s3, %s280
          %s283 = sshll.u32 %s274, 4
          %s284 = int_to_ptr.vmem [resolvable:$true] %s283
          %286 = dma.hbm_to_vmem [thread:$0]  %s281, 64, %s284, %s271
        $region32: #{tpu_custom_call.1} parent=15 // pred_fallthru
          _
      $region16: #{tpu_custom_call.1} parent=5 // pred_fallthru
        _
      %p287 = scmp.le.s32.totalorder 1, %s22
      %p288 = scmp.lt.s32.totalorder %s22, 5
      %p289 = pnand %p287, %p288
      %p290 = pneg %p289
      // Predicated region
      $region33: #{tpu_custom_call.1} parent=5 // pred_check
        _
      $region34: #{tpu_custom_call.1} parent=5 // pred_check_branch
        %292 = sbr.rel (%p289) target = $region36
      $region35: #{tpu_custom_call.1} parent=5 // pred_region
        %s293 = ssub.s32 %s22, 1
        %s294 = sand.u32 %s56, 1
        %s295 = scalar_lea.sflag [#allocation4], %s294
        %s296 = sand.u32 %s56, 1
        %s297 = smul.addr %s296, 16
        %s298 = scalar_lea.vmem [#allocation3], %s297
        // Predicated region
        $region37: #{tpu_custom_call.1} parent=35 // pred_check
          %p299 = pneg %p69
        $region38: #{tpu_custom_call.1} parent=35 // pred_check_branch
          %301 = sbr.rel (%p299) target = $region40
        $region39: #{tpu_custom_call.1} parent=35 // pred_region
          %302 = dma.done %s295, 256
        $region40: #{tpu_custom_call.1} parent=35 // pred_fallthru
          _
        %s303 = sand.u32 %s27, 1
        %s304 = scalar_lea.sflag [#allocation7], %s303
        %s305 = sand.u32 %s84, 1
        %s306 = smul.addr %s305, 32
        %s307 = scalar_lea.vmem [#allocation6], %s306
        // Predicated region
        $region41: #{tpu_custom_call.1} parent=35 // pred_check
          %p308 = pneg %p97
        $region42: #{tpu_custom_call.1} parent=35 // pred_check_branch
          %310 = sbr.rel (%p308) target = $region44
        $region43: #{tpu_custom_call.1} parent=35 // pred_region
          %311 = dma.done %s304, 512
        $region44: #{tpu_custom_call.1} parent=35 // pred_fallthru
          _
        %s312 = sand.u32 %s27, 1
        %s313 = scalar_lea.sflag [#allocation7], %s312
        %s314 = sand.u32 %s112, 1
        %s315 = smul.addr %s314, 4
        %s316 = scalar_lea.vmem [#allocation8], %s315
        // Predicated region
        $region45: #{tpu_custom_call.1} parent=35 // pred_check
          %p317 = pneg %p125
        $region46: #{tpu_custom_call.1} parent=35 // pred_check_branch
          %319 = sbr.rel (%p317) target = $region48
        $region47: #{tpu_custom_call.1} parent=35 // pred_region
          %320 = dma.done %s313, 64
        $region48: #{tpu_custom_call.1} parent=35 // pred_fallthru
          _
        %s321 = sand.u32 %s140, 1
        %s322 = scalar_lea.sflag [#allocation10], %s321
        %s323 = sand.u32 %s140, 1
        %s324 = smul.addr %s323, 4
        %s325 = scalar_lea.vmem [#allocation9], %s324
        // Predicated region
        $region49: #{tpu_custom_call.1} parent=35 // pred_check
          %p326 = pneg %p153
        $region50: #{tpu_custom_call.1} parent=35 // pred_check_branch
          %328 = sbr.rel (%p326) target = $region52
        $region51: #{tpu_custom_call.1} parent=35 // pred_region
          %329 = dma.done %s322, 64
        $region52: #{tpu_custom_call.1} parent=35 // pred_fallthru
          _
        %s330 = sand.u32 %s56, 1
        %s331 = scalar_lea.sflag [#allocation4], %s330
        %s332 = sand.u32 %s56, 1
        %s333 = smul.addr %s332, 16
        %s334 = scalar_lea.vmem [#allocation3], %s333
        %p335 = pneg %p69
        %p336 = pneg %p66
        %s337 = sand.u32 %s27, 1
        %s338 = scalar_lea.sflag [#allocation7], %s337
        %s339 = sand.u32 %s84, 1
        %s340 = smul.addr %s339, 32
        %s341 = scalar_lea.vmem [#allocation6], %s340
        %p342 = pneg %p97
        %p343 = pneg %p94
        %s344 = sand.u32 %s27, 1
        %s345 = scalar_lea.sflag [#allocation7], %s344
        %s346 = sand.u32 %s112, 1
        %s347 = smul.addr %s346, 4
        %s348 = scalar_lea.vmem [#allocation8], %s347
        %p349 = pneg %p125
        %p350 = pneg %p122
        %s351 = sand.u32 %s140, 1
        %s352 = scalar_lea.sflag [#allocation10], %s351
        %s353 = sand.u32 %s140, 1
        %s354 = smul.addr %s353, 4
        %s355 = scalar_lea.vmem [#allocation9], %s354
        %p356 = pneg %p153
        %p357 = pneg %p150
        %p358 = pneg %p181
        %p359 = pneg %p178
        %s360 = sand.u32 %s168, 1
        %s361 = scalar_lea.sflag [#allocation5], %s360
        %s362 = sand.u32 %s168, 1
        %s363 = smul.addr %s362, 16
        %s364 = scalar_lea.vmem [#allocation11], %s363
        %s365 = smul.u32 2, %s32
        %s366 = smul.u32 2, %s34
        %s367 = smul.u32 4, %s34
        %s368 = smul.u32 2, %s32
        %p370 = scmp.eq.s32.totalorder %s34, 0
        // Predicated region
        $region53: #{tpu_custom_call.1} parent=35 // pred_check
          %p371 = pneg %p370
        $region54: #{tpu_custom_call.1} parent=35 // pred_check_branch
          %373 = sbr.rel (%p371) target = $region56
        $region55: #{tpu_custom_call.1} parent=35 // pred_region
          %374 = vst [vmem:[#allocation2] sm:$0xff] 0.0
          %375 = vst [vmem:[#allocation2 + $0x8] sm:$0xff] 0.0
        $region56: #{tpu_custom_call.1} parent=35 // pred_fallthru
          _
        %v376 = vld [vmem:[%s307] sm:$0xff]
        %v377 = vld [vmem:[%s307 + $0x8] sm:$0xff]
        %v378 = vld [vmem:[%s307 + $0x10] sm:$0xff]
        %v379 = vld [vmem:[%s307 + $0x18] sm:$0xff]
        %v380 = vunpack.c.0.s8 %v376
        %v381 = vunpack.c.1.s8 %v376
        %v382 = vunpack.c.2.s8 %v376
        %v383 = vunpack.c.3.s8 %v376
        %v384 = vunpack.c.0.s8 %v377
        %v385 = vunpack.c.1.s8 %v377
        %v386 = vunpack.c.2.s8 %v377
        %v387 = vunpack.c.3.s8 %v377
        %v388 = vunpack.c.0.s8 %v378
        %v389 = vunpack.c.1.s8 %v378
        %v390 = vunpack.c.2.s8 %v378
        %v391 = vunpack.c.3.s8 %v378
        %v392 = vunpack.c.0.s8 %v379
        %v393 = vunpack.c.1.s8 %v379
        %v394 = vunpack.c.2.s8 %v379
        %v395 = vunpack.c.3.s8 %v379
        %v396 = vand.u32 %v380, 255
        %v397 = vand.u32 %v381, 255
        %v398 = vand.u32 %v382, 255
        %v399 = vand.u32 %v383, 255
        %v400 = vand.u32 %v384, 255
        %v401 = vand.u32 %v385, 255
        %v402 = vand.u32 %v386, 255
        %v403 = vand.u32 %v387, 255
        %v404 = vand.u32 %v388, 255
        %v405 = vand.u32 %v389, 255
        %v406 = vand.u32 %v390, 255
        %v407 = vand.u32 %v391, 255
        %v408 = vand.u32 %v392, 255
        %v409 = vand.u32 %v393, 255
        %v410 = vand.u32 %v394, 255
        %v411 = vand.u32 %v395, 255
        %v412 = vand.u32 %v396, 15
        %v413 = vand.u32 %v397, 15
        %v414 = vand.u32 %v398, 15
        %v415 = vand.u32 %v399, 15
        %v416 = vand.u32 %v400, 15
        %v417 = vand.u32 %v401, 15
        %v418 = vand.u32 %v402, 15
        %v419 = vand.u32 %v403, 15
        %v420 = vand.u32 %v404, 15
        %v421 = vand.u32 %v405, 15
        %v422 = vand.u32 %v406, 15
        %v423 = vand.u32 %v407, 15
        %v424 = vand.u32 %v408, 15
        %v425 = vand.u32 %v409, 15
        %v426 = vand.u32 %v410, 15
        %v427 = vand.u32 %v411, 15
        %v428 = vshra.s32 %v396, 4
        %v429 = vshra.s32 %v397, 4
        %v430 = vshra.s32 %v398, 4
        %v431 = vshra.s32 %v399, 4
        %v432 = vshra.s32 %v400, 4
        %v433 = vshra.s32 %v401, 4
        %v434 = vshra.s32 %v402, 4
        %v435 = vshra.s32 %v403, 4
        %v436 = vshra.s32 %v404, 4
        %v437 = vshra.s32 %v405, 4
        %v438 = vshra.s32 %v406, 4
        %v439 = vshra.s32 %v407, 4
        %v440 = vshra.s32 %v408, 4
        %v441 = vshra.s32 %v409, 4
        %v442 = vshra.s32 %v410, 4
        %v443 = vshra.s32 %v411, 4
        %v444 = vld [vmem:[%s316] sm:$0xf]
        %v445 = vld [vmem:[%s325] sm:$0xf]
        %v446 = vcvt.s32.f32 %v412
        %v447 = vcvt.s32.f32 %v413
        %v448 = vcvt.s32.f32 %v414
        %v449 = vcvt.s32.f32 %v415
        %v450 = vcvt.s32.f32 %v416
        %v451 = vcvt.s32.f32 %v417
        %v452 = vcvt.s32.f32 %v418
        %v453 = vcvt.s32.f32 %v419
        %v454 = vcvt.s32.f32 %v420
        %v455 = vcvt.s32.f32 %v421
        %v456 = vcvt.s32.f32 %v422
        %v457 = vcvt.s32.f32 %v423
        %v458 = vcvt.s32.f32 %v424
        %v459 = vcvt.s32.f32 %v425
        %v460 = vcvt.s32.f32 %v426
        %v461 = vcvt.s32.f32 %v427
        %v464 = vunpack.c.l.s4 1966171168
        %v465 = vunpack.c.0.s8 %v464
        %v466 = vlaneseq
        %v467 = vshrl.u32 %v466, 7
        %v468 = vsub.s32 %v465, %v467
        %v469 = vrot.slane %v444, %v468
        %v470 = vcombine.high %v469, %v469
        %v472 = vunpack.c.l.s4 1966171168
        %v473 = vunpack.c.0.s8 %v472
        %v474 = vlaneseq
        %v475 = vshrl.u32 %v474, 7
        %v476 = vsub.s32 %v473, %v475
        %v477 = vrot.slane %v469, %v476
        %v479 = vunpack.c.l.s4 1966171168
        %v480 = vunpack.c.0.s8 %v479
        %v481 = vlaneseq
        %v482 = vshrl.u32 %v481, 7
        %v483 = vsub.s32 %v480, %v482
        %v484 = vrot.slane %v470, %v483
        %v485 = vlaneseq
        %v486 = vshrl.u32 %v485, 7
        %v487 = vsub.s32 0, %v486
        %v488 = vrot.slane %v477, %v487
        %v489 = vlaneseq
        %v490 = vshrl.u32 %v489, 7
        %v491 = vsub.s32 0, %v490
        %v492 = vrot.slane %v484, %v491
        %v495 = vmul.f32 %v446, %v488
        %v496 = vmul.f32 %v447, %v488
        %v497 = vmul.f32 %v448, %v488
        %v498 = vmul.f32 %v449, %v488
        %v499 = vmul.f32 %v450, %v488
        %v500 = vmul.f32 %v451, %v488
        %v501 = vmul.f32 %v452, %v488
        %v502 = vmul.f32 %v453, %v488
        %v503 = vmul.f32 %v454, %v492
        %v504 = vmul.f32 %v455, %v492
        %v505 = vmul.f32 %v456, %v492
        %v506 = vmul.f32 %v457, %v492
        %v507 = vmul.f32 %v458, %v492
        %v508 = vmul.f32 %v459, %v492
        %v509 = vmul.f32 %v460, %v492
        %v510 = vmul.f32 %v461, %v492
        %v513 = vunpack.c.l.s4 1966171168
        %v514 = vunpack.c.0.s8 %v513
        %v515 = vlaneseq
        %v516 = vshrl.u32 %v515, 7
        %v517 = vsub.s32 %v514, %v516
        %v518 = vrot.slane %v445, %v517
        %v519 = vcombine.high %v518, %v518
        %v521 = vunpack.c.l.s4 1966171168
        %v522 = vunpack.c.0.s8 %v521
        %v523 = vlaneseq
        %v524 = vshrl.u32 %v523, 7
        %v525 = vsub.s32 %v522, %v524
        %v526 = vrot.slane %v518, %v525
        %v528 = vunpack.c.l.s4 1966171168
        %v529 = vunpack.c.0.s8 %v528
        %v530 = vlaneseq
        %v531 = vshrl.u32 %v530, 7
        %v532 = vsub.s32 %v529, %v531
        %v533 = vrot.slane %v519, %v532
        %v534 = vlaneseq
        %v535 = vshrl.u32 %v534, 7
        %v536 = vsub.s32 0, %v535
        %v537 = vrot.slane %v526, %v536
        %v538 = vlaneseq
        %v539 = vshrl.u32 %v538, 7
        %v540 = vsub.s32 0, %v539
        %v541 = vrot.slane %v533, %v540
        %v544 = vadd.f32 %v495, %v537
        %v545 = vadd.f32 %v496, %v537
        %v546 = vadd.f32 %v497, %v537
        %v547 = vadd.f32 %v498, %v537
        %v548 = vadd.f32 %v499, %v537
        %v549 = vadd.f32 %v500, %v537
        %v550 = vadd.f32 %v501, %v537
        %v551 = vadd.f32 %v502, %v537
        %v552 = vadd.f32 %v503, %v541
        %v553 = vadd.f32 %v504, %v541
        %v554 = vadd.f32 %v505, %v541
        %v555 = vadd.f32 %v506, %v541
        %v556 = vadd.f32 %v507, %v541
        %v557 = vadd.f32 %v508, %v541
        %v558 = vadd.f32 %v509, %v541
        %v559 = vadd.f32 %v510, %v541
        %v560 = vpack.c.bf16 %v545, %v544
        %v561 = vpack.c.bf16 %v547, %v546
        %v562 = vpack.c.bf16 %v549, %v548
        %v563 = vpack.c.bf16 %v551, %v550
        %v564 = vpack.c.bf16 %v553, %v552
        %v565 = vpack.c.bf16 %v555, %v554
        %v566 = vpack.c.bf16 %v557, %v556
        %v567 = vpack.c.bf16 %v559, %v558
        %v568 = vcvt.s32.f32 %v428
        %v569 = vcvt.s32.f32 %v429
        %v570 = vcvt.s32.f32 %v430
        %v571 = vcvt.s32.f32 %v431
        %v572 = vcvt.s32.f32 %v432
        %v573 = vcvt.s32.f32 %v433
        %v574 = vcvt.s32.f32 %v434
        %v575 = vcvt.s32.f32 %v435
        %v576 = vcvt.s32.f32 %v436
        %v577 = vcvt.s32.f32 %v437
        %v578 = vcvt.s32.f32 %v438
        %v579 = vcvt.s32.f32 %v439
        %v580 = vcvt.s32.f32 %v440
        %v581 = vcvt.s32.f32 %v441
        %v582 = vcvt.s32.f32 %v442
        %v583 = vcvt.s32.f32 %v443
        %v584 = vcombine.high %v477, %v477
        %v585 = vcombine.high %v484, %v484
        %v586 = vlaneseq
        %v587 = vshrl.u32 %v586, 7
        %v588 = vsub.s32 0, %v587
        %v589 = vrot.slane %v584, %v588
        %v590 = vlaneseq
        %v591 = vshrl.u32 %v590, 7
        %v592 = vsub.s32 0, %v591
        %v593 = vrot.slane %v585, %v592
        %v596 = vmul.f32 %v568, %v589
        %v597 = vmul.f32 %v569, %v589
        %v598 = vmul.f32 %v570, %v589
        %v599 = vmul.f32 %v571, %v589
        %v600 = vmul.f32 %v572, %v589
        %v601 = vmul.f32 %v573, %v589
        %v602 = vmul.f32 %v574, %v589
        %v603 = vmul.f32 %v575, %v589
        %v604 = vmul.f32 %v576, %v593
        %v605 = vmul.f32 %v577, %v593
        %v606 = vmul.f32 %v578, %v593
        %v607 = vmul.f32 %v579, %v593
        %v608 = vmul.f32 %v580, %v593
        %v609 = vmul.f32 %v581, %v593
        %v610 = vmul.f32 %v582, %v593
        %v611 = vmul.f32 %v583, %v593
        %v612 = vcombine.high %v526, %v526
        %v613 = vcombine.high %v533, %v533
        %v614 = vlaneseq
        %v615 = vshrl.u32 %v614, 7
        %v616 = vsub.s32 0, %v615
        %v617 = vrot.slane %v612, %v616
        %v618 = vlaneseq
        %v619 = vshrl.u32 %v618, 7
        %v620 = vsub.s32 0, %v619
        %v621 = vrot.slane %v613, %v620
        %v624 = vadd.f32 %v596, %v617
        %v625 = vadd.f32 %v597, %v617
        %v626 = vadd.f32 %v598, %v617
        %v627 = vadd.f32 %v599, %v617
        %v628 = vadd.f32 %v600, %v617
        %v629 = vadd.f32 %v601, %v617
        %v630 = vadd.f32 %v602, %v617
        %v631 = vadd.f32 %v603, %v617
        %v632 = vadd.f32 %v604, %v621
        %v633 = vadd.f32 %v605, %v621
        %v634 = vadd.f32 %v606, %v621
        %v635 = vadd.f32 %v607, %v621
        %v636 = vadd.f32 %v608, %v621
        %v637 = vadd.f32 %v609, %v621
        %v638 = vadd.f32 %v610, %v621
        %v639 = vadd.f32 %v611, %v621
        %v640 = vpack.c.bf16 %v625, %v624
        %v641 = vpack.c.bf16 %v627, %v626
        %v642 = vpack.c.bf16 %v629, %v628
        %v643 = vpack.c.bf16 %v631, %v630
        %v644 = vpack.c.bf16 %v633, %v632
        %v645 = vpack.c.bf16 %v635, %v634
        %v646 = vpack.c.bf16 %v637, %v636
        %v647 = vpack.c.bf16 %v639, %v638
        %v648 = vld [vmem:[%s298] sm:$0xff]
        %v649 = vld [vmem:[%s298 + $0x8] sm:$0xff]
        %v650 = vld [vmem:[#allocation2] sm:$0xff]
        %v651 = vld [vmem:[#allocation2 + $0x8] sm:$0xff]
        %v654 = vunpack.c.h.b16 %v648
        %v655 = vunpack.c.h.b16 %v649
        %v656 = vpack.c.b16 %v655, %v654
        %658 = vmatprep.subr.bf16.mxu0 0
        %659 = vmatpush1.bf16.msra.mxu0 %v640
        %660 = vmatprep.subr.bf16.mxu0 0
        %661 = vmatpush1.bf16.msra.mxu0 %v641
        %662 = vmatprep.subr.bf16.mxu0 0
        %663 = vmatpush1.bf16.msra.mxu0 %v642
        %664 = vmatprep.subr.bf16.mxu0 0
        %665 = vmatpush1.bf16.msra.mxu0 %v643
        %666 = vmatprep.subr.bf16.mxu0 0
        %667 = vmatpush1.bf16.msra.mxu0 %v644
        %668 = vmatprep.subr.bf16.mxu0 0
        %669 = vmatpush1.bf16.msra.mxu0 %v645
        %670 = vmatprep.subr.bf16.mxu0 0
        %671 = vmatpush1.bf16.msra.mxu0 %v646
        %672 = vmatprep.subr.bf16.mxu0 0
        %673 = vmatpush1.bf16.msra.mxu0 %v647
        %674 = vmatprep.subr.bf16.mxu0 0
        %675 = vmatpush1.bf16.msra.mxu0 0
        %676 = vmatprep.subr.bf16.mxu0 0
        %677 = vmatpush1.bf16.msra.mxu0 0
        %678 = vmatprep.subr.bf16.mxu0 0
        %679 = vmatpush1.bf16.msra.mxu0 0
        %680 = vmatprep.subr.bf16.mxu0 0
        %681 = vmatpush1.bf16.msra.mxu0 0
        %682 = vmatprep.subr.bf16.mxu0 0
        %683 = vmatpush1.bf16.msra.mxu0 0
        %684 = vmatprep.subr.bf16.mxu0 0
        %685 = vmatpush1.bf16.msra.mxu0 0
        %686 = vmatprep.subr.bf16.mxu0 0
        %687 = vmatpush1.bf16.msra.mxu0 0
        %688 = vmatprep.subr.bf16.mxu0 0
        %689 = vmatpush1.bf16.msra.mxu0 0
        %690 = vmatprep.mubr.bf16.mxu0 0
        %691 = vmatmul.mubr.bf16.gmra.mrb[0].mxu0 %v656
        %v692 = vpop.f32.mrb[0].mxu0
        %v693 = vadd.f32 0.0, %v692
        %v694 = vpop.f32.mrb[0].mxu0
        %v695 = vpop.f32.mrb[0].mxu0
        %v696 = vadd.f32 0.0, %v695
        %v697 = vpop.f32.mrb[0].mxu0
        %698 = vdwg.mxu0
        %v699 = vunpack.c.l.b16 %v648
        %v700 = vunpack.c.l.b16 %v649
        %v701 = vpack.c.b16 %v700, %v699
        %703 = vmatprep.subr.bf16.mxu0 0
        %704 = vmatpush1.bf16.msra.mxu0 %v560
        %705 = vmatprep.subr.bf16.mxu0 0
        %706 = vmatpush1.bf16.msra.mxu0 %v561
        %707 = vmatprep.subr.bf16.mxu0 0
        %708 = vmatpush1.bf16.msra.mxu0 %v562
        %709 = vmatprep.subr.bf16.mxu0 0
        %710 = vmatpush1.bf16.msra.mxu0 %v563
        %711 = vmatprep.subr.bf16.mxu0 0
        %712 = vmatpush1.bf16.msra.mxu0 %v564
        %713 = vmatprep.subr.bf16.mxu0 0
        %714 = vmatpush1.bf16.msra.mxu0 %v565
        %715 = vmatprep.subr.bf16.mxu0 0
        %716 = vmatpush1.bf16.msra.mxu0 %v566
        %717 = vmatprep.subr.bf16.mxu0 0
        %718 = vmatpush1.bf16.msra.mxu0 %v567
        %719 = vmatprep.subr.bf16.mxu0 0
        %720 = vmatpush1.bf16.msra.mxu0 0
        %721 = vmatprep.subr.bf16.mxu0 0
        %722 = vmatpush1.bf16.msra.mxu0 0
        %723 = vmatprep.subr.bf16.mxu0 0
        %724 = vmatpush1.bf16.msra.mxu0 0
        %725 = vmatprep.subr.bf16.mxu0 0
        %726 = vmatpush1.bf16.msra.mxu0 0
        %727 = vmatprep.subr.bf16.mxu0 0
        %728 = vmatpush1.bf16.msra.mxu0 0
        %729 = vmatprep.subr.bf16.mxu0 0
        %730 = vmatpush1.bf16.msra.mxu0 0
        %731 = vmatprep.subr.bf16.mxu0 0
        %732 = vmatpush1.bf16.msra.mxu0 0
        %733 = vmatprep.subr.bf16.mxu0 0
        %734 = vmatpush1.bf16.msra.mxu0 0
        %735 = vmatprep.mubr.bf16.mxu0 0
        %736 = vmatmul.mubr.bf16.gmra.mrb[0].mxu0 %v701
        %v737 = vpop.f32.mrb[0].mxu0
        %v738 = vadd.f32 %v693, %v737
        %v739 = vpop.f32.mrb[0].mxu0
        %v740 = vpop.f32.mrb[0].mxu0
        %v741 = vadd.f32 %v696, %v740
        %v742 = vpop.f32.mrb[0].mxu0
        %743 = vdwg.mxu0
        %v744 = vadd.f32 %v650, %v738
        %v745 = vadd.f32 %v651, %v741
        %746 = vst [vmem:[#allocation2] sm:$0xff] %v744
        %747 = vst [vmem:[#allocation2 + $0x8] sm:$0xff] %v745
        %p748 = scmp.eq.s32.totalorder %s34, 1
        // Predicated region
        $region57: #{tpu_custom_call.1} parent=35 // pred_check
          %p749 = pneg %p748
        $region58: #{tpu_custom_call.1} parent=35 // pred_check_branch
          %751 = sbr.rel (%p749) target = $region60
        $region59: #{tpu_custom_call.1} parent=35 // pred_region
          %v752 = vld [vmem:[#allocation2] sm:$0xff]
          %v753 = vld [vmem:[#allocation2 + $0x8] sm:$0xff]
          %754 = vst [vmem:[%s364] sm:$0xff] %v752
          %755 = vst [vmem:[%s364 + $0x8] sm:$0xff] %v753
        $region60: #{tpu_custom_call.1} parent=35 // pred_fallthru
          _
        %s756 = sand.u32 %s168, 1
        %s757 = scalar_lea.sflag [#allocation5], %s756
        %s758 = sand.u32 %s168, 1
        %s759 = smul.addr %s758, 16
        %s760 = scalar_lea.vmem [#allocation11], %s759
        // Predicated region
        $region61: #{tpu_custom_call.1} parent=35 // pred_check
          %p761 = pneg %p178
        $region62: #{tpu_custom_call.1} parent=35 // pred_check_branch
          %763 = sbr.rel (%p761) target = $region64
        $region63: #{tpu_custom_call.1} parent=35 // pred_region
          %s764 = smul.u32 2, %s32
          %s766 = ssub.s32 256, 256
          %767 = vsyncadd %s757, %s766
          %s768 = smul.addr %s764, 2
          %s769 = sadd.s32 %s33, %s768
          %s770 = smul.addr %s769, 128
          %s771 = scalar_lea.hbm %s4, %s770
          %s772 = sshll.u32 %s760, 4
          %s773 = int_to_ptr.vmem [resolvable:$true] %s772
          %778 = dma.vmem_to_hbm [thread:$0]  %s773, 256, %s771, %s757, 128, 256, 8
        $region64: #{tpu_custom_call.1} parent=35 // pred_fallthru
          _
      $region36: #{tpu_custom_call.1} parent=5 // pred_fallthru
        _
      %p779 = scmp.le.s32.totalorder 2, %s22
      // Predicated region
      $region65: #{tpu_custom_call.1} parent=5 // pred_check
        %p780 = pneg %p779
      $region66: #{tpu_custom_call.1} parent=5 // pred_check_branch
        %782 = sbr.rel (%p780) target = $region68
      $region67: #{tpu_custom_call.1} parent=5 // pred_region
        %s783 = ssub.s32 %s22, 2
        // Predicated region
        $region69: #{tpu_custom_call.1} parent=67 // pred_check
          %p784 = pneg %p184
        $region70: #{tpu_custom_call.1} parent=67 // pred_check_branch
          %786 = sbr.rel (%p784) target = $region72
        $region71: #{tpu_custom_call.1} parent=67 // pred_region
          %s787 = sand.u32 %s169, 1
          %s788 = scalar_lea.sflag [#allocation5], %s787
          %s789 = sand.u32 %s169, 1
          %s790 = smul.addr %s789, 16
          %s791 = scalar_lea.vmem [#allocation11], %s790
          %792 = dma.done %s788, 256
        $region72: #{tpu_custom_call.1} parent=67 // pred_fallthru
          _
      $region68: #{tpu_custom_call.1} parent=5 // pred_fallthru
        _
    $region6: #{tpu_custom_call.1} parent=1 // loop_footer
      %s26 = sadd.s32 1, %s22
    $region7: #{tpu_custom_call.1} parent=1 // loop_footer_branch
      %21 = sbr.rel target = $region3
    $region8: #{tpu_custom_call.1} parent=1 // loop_exit
      _
    %793 = vsyncpa [#allocation4], 1
    %s794 = scalar_lea.sflag [#allocation4], 1
    %795 = vsyncpa %s794, 1
    %796 = vsyncpa [#allocation7], 1
    %s797 = scalar_lea.sflag [#allocation7], 1
    %798 = vsyncpa %s797, 1
    %799 = vsyncpa [#allocation10], 1
    %s800 = scalar_lea.sflag [#allocation10], 1
    %801 = vsyncpa %s800, 1
    %802 = vsyncpa [#allocation5], 1
    %s803 = scalar_lea.sflag [#allocation5], 1
    %804 = vsyncpa %s803, 1

</llo_original>
